<compile_context>
chip_gen: v6e
topology: v6e:2x2x1
jax: 0.10.0
libtpu: 0.0.40
codegen_flags: <defaults>
</compile_context>

<pallas_src>
import functools

import numpy as np
import jax
import jax.numpy as jnp
from jax.experimental import pallas as pl
from jax.experimental.pallas import tpu as pltpu


def _round_up(x, m):
    return (x + m - 1) // m * m


def _dft_matrices_np(N):
    """Trace-time (numpy) real matrices implementing rfft / irfft on the last axis.

    rfft:  Xr = x @ Fr, Xi = x @ Fi        Fr, Fi: (N, F)
    irfft: y  = Yr @ Gr + Yi @ Gi          Gr, Gi: (F, N)
    """
    F = N // 2 + 1
    n = np.arange(N, dtype=np.float64)[:, None]          # (N, 1)
    k = np.arange(F, dtype=np.float64)[None, :]          # (1, F)
    ang = 2.0 * np.pi * n * k / N                        # (N, F)
    Fr = np.cos(ang)
    Fi = -np.sin(ang)
    # irfft weights: DC (and Nyquist when N even) count once, all others twice.
    # sin(ang) is 0 for those rows, so the imaginary parts of DC/Nyquist are
    # discarded exactly as torch.fft.irfft does.
    w = np.where((k == 0) | ((N % 2 == 0) & (k == N // 2)), 1.0, 2.0)
    Gr = (w * np.cos(ang) / N).T                         # (F, N)
    Gi = (-w * np.sin(ang) / N).T                        # (F, N)
    return (Fr.astype(np.float32), Fi.astype(np.float32),
            Gr.astype(np.float32), Gi.astype(np.float32))


def _fused_gemm_bias_kernel(x_ref, w_ref, b_ref, out_ref, *, compute_dtype):
    # (tm, D) x (D, tn) GEMM on the MXU, f32 accumulation, + f32 bias.
    # Casts happen on data already resident in VMEM (no extra HBM pass).
    x = x_ref[...]
    if x.dtype != compute_dtype:
        x = x.astype(compute_dtype)
    w = w_ref[...]
    if w.dtype != compute_dtype:
        w = w.astype(compute_dtype)
    acc = jnp.dot(x, w, preferred_element_type=jnp.float32)
    out_ref[...] = (acc + b_ref[...]).astype(out_ref.dtype)


def _choose_tiles(M, D, Dp, x_bytes, w_bytes, out_bytes, tm_req):
    """Pick (row tile, weight column tile, vmem limit) from actual buffer sizes."""
    VMEM_BUDGET = 48 * 1024 * 1024   # comfortably under v7x's 64 MiB per TC
    SLACK = 4 * 1024 * 1024

    # Multiple of 16 rows (bf16 packs 2 rows / sublane); for short inputs clamp
    # so the parallel row axis still gets >= 2 steps (v7x has 2 TensorCores).
    tm = max(16, min(_round_up(tm_req, 16), _round_up(pl.cdiv(M, 2), 16)))

    def usage(tm, tn):
        w_buf = 2 * D * tn * w_bytes          # constant index_map, but Pallas
        b_buf = 2 * tn * 4                    # still reserves 2 buffers each
        x_buf = 2 * tm * D * x_bytes          # double-buffered row tile
        o_buf = 2 * tm * tn * out_bytes       # double-buffered output tile
        return w_buf + b_buf + x_buf + o_buf

    # Prefer a fully-resident weight (tn == Dp): weight streamed from HBM once.
    # Only N-tile when it cannot fit (very large d_model, e.g. on v7x).
    tn = Dp
    while tn > 128 and 2 * D * tn * w_bytes > VMEM_BUDGET // 2:
        tn = _round_up(tn // 2, 128)
    while tm > 16 and usage(tm, tn) > VMEM_BUDGET:
        tm = max(16, _round_up(tm // 2, 16))

    vmem_limit = int(min(56 * 1024 * 1024,
                         max(usage(tm, tn) + SLACK, 16 * 1024 * 1024)))
    return tm, tn, vmem_limit


@functools.partial(jax.jit, static_argnames=("tm", "compute_dtype", "out_dtype"))
def tf_linear(inp, params, *, tm=512, compute_dtype=jnp.bfloat16, out_dtype=None):
    """inp: (B, L, D). params: dict with wt (D,D), bt (D,), wr/wi (F,F), br/bi (F,)."""
    B, L, D = inp.shape
    assert D % 2 == 0, "TF_Linear requires an even d_model (irfft output length 2*(F-1))."
    M = B * L
    out_dtype = inp.dtype if out_dtype is None else out_dtype

    # ---- fold rfft -> complex Linear -> irfft with the temporal Linear --------
    Fr, Fi, Gr, Gi = map(jnp.asarray, _dft_matrices_np(D))   # trace-time constants
    wt, bt = params["wt"], params["bt"]
    wr, wi = params["wr"], params["wi"]
    br, bi = params["br"], params["bi"]

    a_r = Fr @ wr.T - Fi @ wi.T                 # (D, F): x -> Re(rfft(x) @ W^T)
    a_i = Fr @ wi.T + Fi @ wr.T                 # (D, F): x -> Im(rfft(x) @ W^T)
    w_comb = wt.T + a_r @ Gr + a_i @ Gi         # (D, D), oriented for x @ W (no .T in-kernel)
    b_comb = bt + br @ Gr + bi @ Gi             # (D,)

    # ---- pad ONLY the output axis of weight/bias to a lane-dense width --------
    Dp = max(_round_up(D, 128), 128)
    if Dp != D:
        w_comb = jnp.pad(w_comb, ((0, 0), (0, Dp - D)))
        b_comb = jnp.pad(b_comb, ((0, Dp - D),))
    # Weight bytes are amortized over M, so its dtype is a pure accuracy knob
    # (pass compute_dtype=jnp.float32 for a full-precision path).
    w_comb = w_comb.astype(compute_dtype)
    b_comb = b_comb.reshape(1, Dp).astype(jnp.float32)

    # x: reshape is a view; NO pad, NO standalone cast pass (cast happens in-kernel).
    x2 = inp.reshape(M, D)

    x_bytes = jnp.dtype(x2.dtype).itemsize
    w_bytes = jnp.dtype(compute_dtype).itemsize
    o_bytes = jnp.dtype(out_dtype).itemsize
    tm_eff, tn, vmem_limit = _choose_tiles(M, D, Dp, x_bytes, w_bytes, o_bytes, tm)

    n_rows = pl.cdiv(M, tm_eff)
    n_cols = pl.cdiv(Dp, tn)
    grid = (n_rows, n_cols)

    cost = pl.CostEstimate(
        flops=2 * M * D * Dp,
        transcendentals=0,
        bytes_accessed=(M * D * x_bytes + M * Dp * o_bytes
                        + D * Dp * w_bytes * (n_rows if n_cols > 1 else 1)
                        + Dp * 4),
    )

    kernel = functools.partial(_fused_gemm_bias_kernel, compute_dtype=compute_dtype)
    out = pl.pallas_call(
        kernel,
        out_shape=jax.ShapeDtypeStruct((M, Dp), out_dtype),
        grid=grid,
        in_specs=[
            pl.BlockSpec((tm_eff, D), lambda i, j: (i, 0)),   # x row tile (pipelined,
                                                              # resident across j)
            pl.BlockSpec((D, tn), lambda i, j: (0, j)),       # fused weight
            pl.BlockSpec((1, tn), lambda i, j: (0, j)),       # fused bias (f32)
        ],
        out_specs=pl.BlockSpec((tm_eff, tn), lambda i, j: (i, j)),
        compiler_params=pltpu.CompilerParams(
            dimension_semantics=("parallel", "parallel"),
            vmem_limit_bytes=vmem_limit,
        ),
        cost_estimate=cost,
    )(x2, w_comb, b_comb)

    if Dp != D:
        out = out[:, :D]          # no-op when d_model is already a multiple of 128
    return out.reshape(B, L, D)


def _reference(inp, params):
    """Pure-JAX reference mirroring the PyTorch forward (uses jnp.fft)."""
    D = inp.shape[-1]
    temporal = inp @ params["wt"].T + params["bt"]
    xf = jnp.fft.rfft(inp, axis=-1)
    W = params["wr"] + 1j * params["wi"]
    b = params["br"] + 1j * params["bi"]
    yf = xf @ W.T + b
    freq = jnp.fft.irfft(yf, n=D, axis=-1)
    return temporal + freq


def _init_params(key, d_model):
    F = d_model // 2 + 1
    ks = jax.random.split(key, 6)
    s_t = 1.0 / jnp.sqrt(d_model)
    s_f = 1.0 / jnp.sqrt(F)
    return {
        "wt": jax.random.uniform(ks[0], (d_model, d_model), jnp.float32, -s_t, s_t),
        "bt": jax.random.uniform(ks[1], (d_model,), jnp.float32, -s_t, s_t),
        "wr": jax.random.uniform(ks[2], (F, F), jnp.float32, -s_f, s_f),
        "wi": jax.random.uniform(ks[3], (F, F), jnp.float32, -s_f, s_f),
        "br": jax.random.uniform(ks[4], (F,), jnp.float32, -s_f, s_f),
        "bi": jax.random.uniform(ks[5], (F,), jnp.float32, -s_f, s_f),
    }


if __name__ == "__main__":
    B, L, d_model = 2, 8, 32
    key = jax.random.PRNGKey(0)
    k_x, k_p = jax.random.split(key)
    inp = jax.random.normal(k_x, (B, L, d_model), jnp.float32)
    params = _init_params(k_p, d_model)

    out = tf_linear(inp, params)
    out = jax.block_until_ready(out)

    ref = _reference(inp, params)
    assert out.shape == ref.shape
    assert jnp.allclose(out, ref, rtol=5e-2, atol=5e-2), "mismatch vs JAX reference"

    print("KERNEL_OK")
</pallas_src>

<mosaic_0001>
module attributes {stable_mosaic.version = 11 : i64} {
  func.func @_fused_gemm_bias_kernel(%arg0: i32, %arg1: i32, %arg2: memref<16x32xf32, #tpu.memory_space<vmem>>, %arg3: memref<32x128xbf16, #tpu.memory_space<vmem>>, %arg4: memref<1x128xf32, #tpu.memory_space<vmem>>, %arg5: memref<16x128xf32, #tpu.memory_space<vmem>>) attributes {dimension_semantics = [#tpu.dimension_semantics<parallel>, #tpu.dimension_semantics<parallel>], iteration_bounds = array<i64: 1, 1>, scalar_prefetch = 0 : i64, scratch_operands = 0 : i64, tpu.core_type = #tpu.core_type<tc>, window_params = [{transform_indices = @transform_0, window_bounds = array<i64: 16, 32>}, {transform_indices = @transform_1, window_bounds = array<i64: 32, 128>}, {transform_indices = @transform_2, window_bounds = array<i64: 1, 128>}, {transform_indices = @transform_3, window_bounds = array<i64: 16, 128>}]} {
    %c0 = arith.constant 0 : index
    %c0_0 = arith.constant 0 : index
    %0 = vector.load %arg2[%c0, %c0_0] : memref<16x32xf32, #tpu.memory_space<vmem>>, vector<16x32xf32>
    %1 = arith.truncf %0 : vector<16x32xf32> to vector<16x32xbf16>
    %c0_1 = arith.constant 0 : index
    %c0_2 = arith.constant 0 : index
    %2 = vector.load %arg3[%c0_1, %c0_2] : memref<32x128xbf16, #tpu.memory_space<vmem>>, vector<32x128xbf16>
    %cst = arith.constant dense<0.000000e+00> : vector<16x128xf32>
    %3 = tpu.matmul %1, %2, %cst {dimension_numbers = #tpu.dot_dimension_numbers<[1], [0], [0], [1], [0, 0, 1, 1], [], []>} : vector<16x32xbf16>, vector<32x128xbf16>, vector<16x128xf32> -> vector<16x128xf32>
    %c0_3 = arith.constant 0 : index
    %c0_4 = arith.constant 0 : index
    %4 = vector.load %arg4[%c0_3, %c0_4] : memref<1x128xf32, #tpu.memory_space<vmem>>, vector<1x128xf32>
    %5 = vector.broadcast %4 : vector<1x128xf32> to vector<16x128xf32>
    %6 = arith.addf %3, %5 : vector<16x128xf32>
    %c0_5 = arith.constant 0 : index
    %c0_6 = arith.constant 0 : index
    %7 = vector.load %arg5[%c0_5, %c0_6] : memref<16x128xf32, #tpu.memory_space<vmem>>, vector<16x128xf32>
    tpu.vector_store %arg5[%c0_5, %c0_6], %6 {strides = array<i32>} : memref<16x128xf32, #tpu.memory_space<vmem>>, vector<16x128xf32>,
    return
  }
  func.func @transform_0(%arg0: i32, %arg1: i32) -> (i32, i32) {
    %c0_i32 = arith.constant 0 : i32
    %c0_i32_0 = arith.constant 0 : i32
    return %arg0, %c0_i32 : i32, i32
  }
  func.func @transform_1(%arg0: i32, %arg1: i32) -> (i32, i32) {
    %c0_i32 = arith.constant 0 : i32
    %c0_i32_0 = arith.constant 0 : i32
    return %c0_i32, %arg1 : i32, i32
  }
  func.func @transform_2(%arg0: i32, %arg1: i32) -> (i32, i32) {
    %c0_i32 = arith.constant 0 : i32
    %c0_i32_0 = arith.constant 0 : i32
    return %c0_i32, %arg1 : i32, i32
  }
  func.func @transform_3(%arg0: i32, %arg1: i32) -> (i32, i32) {
    %c0_i32 = arith.constant 0 : i32
    return %arg0, %arg1 : i32, i32
  }
}

</mosaic_0001>

<llo_original>
// kernel: tf_linear.1
$region0: #{tf_linear.1}
  #allocation0 [shape = 'u32[]', space=smem, size = 0x4, offset = 0x4, fixed_abs, tag = 'smem constant byte address 0x4 - core index']
  #allocation1 [shape = 'u32[144,128]{1,0:T(1,128)}', space=vmem, size = 0x12000, scoped, tag = 'internal scratch']
  %s0 = inlined_call_operand.vmem [shape: f32[16,32], index: 0, kind: input, shape index: {}]
  %s1 = inlined_call_operand.vmem [shape: bf16[32,128], index: 1, kind: input, shape index: {}]
  %s2 = inlined_call_operand.vmem [shape: f32[1,128], index: 2, kind: input, shape index: {}]
  %s3 = inlined_call_operand.vmem [shape: f32[16,128], index: 3, kind: output, shape index: {}]
  %s4 = sld [smem:[#allocation0]]
  $region22: #{tf_linear.1} parent=0
    _
  %s6 = ssub.s32 1, %s4
  %s7 = scalar_select 0, %s6, %s4
  // Predicated region
  $region2: #{tf_linear.1} parent=0 // pred_check
    _
  $region3: #{tf_linear.1} parent=0 // pred_check_branch
    %9 = sbr.rel (0) target = $region5
  $region4: #{tf_linear.1} parent=0 // pred_region
    _
  $region5: #{tf_linear.1} parent=0 // pred_fallthru
    _
  // Predicated region
  $region6: #{tf_linear.1} parent=0 // pred_check
    _
  $region7: #{tf_linear.1} parent=0 // pred_check_branch
    %11 = sbr.rel (0) target = $region9
  $region8: #{tf_linear.1} parent=0 // pred_region
    _
  $region9: #{tf_linear.1} parent=0 // pred_fallthru
    _
  // Predicated region
  $region10: #{tf_linear.1} parent=0 // pred_check
    _
  $region11: #{tf_linear.1} parent=0 // pred_check_branch
    %13 = sbr.rel (0) target = $region13
  $region12: #{tf_linear.1} parent=0 // pred_region
    _
  $region13: #{tf_linear.1} parent=0 // pred_fallthru
    _
  %v15 = vld [vmem:[%s0] sm:$0xff]
  %v16 = vld [vmem:[%s0 + $0x8] sm:$0xff]
  %v17 = vpack.c.bf16 %v16, %v15
  %v18 = vld [vmem:[%s1] sm:$0xf]
  %v19 = vld [vmem:[%s1 + $0x4] sm:$0xf]
  %v20 = vld [vmem:[%s1 + $0x8] sm:$0xf]
  %v21 = vld [vmem:[%s1 + $0xc] sm:$0xf]
  %v22 = vld [vmem:[%s2] sm:$0x1]
  %v24 = vlaneseq
  %v25 = vshrl.u32 %v24, 7
  %v26 = vsub.s32 0, %v25
  %v27 = vrot.slane %v22, %v26
  %v33 = vunpack.c.l.b16 %v18
  %v34 = vunpack.c.l.b16 %v19
  %v35 = vunpack.c.l.b16 %v20
  %v36 = vunpack.c.l.b16 %v21
  %v37 = vpack.c.b16 %v34, %v33
  %v38 = vpack.c.b16 %v36, %v35
  %vm41 = vcmask 261120
  %v43 = vsel %vm41, %v17, 0
  %45 = vmatprep.subr.bf16.mxu0 0
  %46 = vmatpush1.bf16.msra.mxu0 0
  %47 = vmatprep.subr.bf16.mxu0 0
  %48 = vmatpush1.bf16.msra.mxu0 0
  %49 = vmatprep.subr.bf16.mxu0 0
  %50 = vmatpush1.bf16.msra.mxu0 0
  %51 = vmatprep.subr.bf16.mxu0 0
  %52 = vmatpush1.bf16.msra.mxu0 0
  %53 = vmatprep.subr.bf16.mxu0 0
  %54 = vmatpush1.bf16.msra.mxu0 0
  %55 = vmatprep.subr.bf16.mxu0 0
  %56 = vmatpush1.bf16.msra.mxu0 0
  %57 = vmatprep.subr.bf16.mxu0 0
  %58 = vmatpush1.bf16.msra.mxu0 %v38
  %59 = vmatprep.subr.bf16.mxu0 0
  %60 = vmatpush1.bf16.msra.mxu0 %v37
  %61 = vmatprep.subr.bf16.mxu0 0
  %62 = vmatpush2.bf16.msra.mxu0 0
  %63 = vmatprep.subr.bf16.mxu0 0
  %64 = vmatpush2.bf16.msra.mxu0 0
  %65 = vmatprep.subr.bf16.mxu0 0
  %66 = vmatpush2.bf16.msra.mxu0 0
  %67 = vmatprep.subr.bf16.mxu0 0
  %68 = vmatpush2.bf16.msra.mxu0 0
  %69 = vmatprep.subr.bf16.mxu0 0
  %70 = vmatpush2.bf16.msra.mxu0 0
  %71 = vmatprep.subr.bf16.mxu0 0
  %72 = vmatpush2.bf16.msra.mxu0 0
  %73 = vmatprep.subr.bf16.mxu0 0
  %74 = vmatpush2.bf16.msra.mxu0 0
  %75 = vmatprep.subr.bf16.mxu0 0
  %76 = vmatpush2.bf16.msra.mxu0 0
  %77 = vmatprep.mubr.bf16.mxu0 0
  %78 = vmatmul.mubr.bf16.gmra.mxu0 %v43
  %v79 = vpop.f32.mrf.mxu0
  %v80 = vadd.f32 %v27, %v79
  %v81 = vpop.f32.mrf.mxu0
  %v82 = vpop.f32.mrf.mxu0
  %v83 = vadd.f32 %v27, %v82
  %v84 = vpop.f32.mrf.mxu0
  %85 = vdwg.mxu0
  %86 = vst [vmem:[%s3] sm:$0xff] %v80
  %87 = vst [vmem:[%s3 + $0x8] sm:$0xff] %v83
  // Predicated region
  $region14: #{tf_linear.1} parent=0 // pred_check
    _
  $region15: #{tf_linear.1} parent=0 // pred_check_branch
    %89 = sbr.rel (0) target = $region17
  $region16: #{tf_linear.1} parent=0 // pred_region
    _
  $region17: #{tf_linear.1} parent=0 // pred_fallthru
    _
  // Predicated region
  $region18: #{tf_linear.1} parent=0 // pred_check
    _
  $region19: #{tf_linear.1} parent=0 // pred_check_branch
    %91 = sbr.rel (0) target = $region21
  $region20: #{tf_linear.1} parent=0 // pred_region
    _
  $region21: #{tf_linear.1} parent=0 // pred_fallthru
    _

</llo_original>
